<compile_context>
chip_gen: v6e
topology: v6e:2x2x1
jax: 0.10.0
libtpu: 0.0.40
codegen_flags: <defaults>
</compile_context>

<pallas_src>
import functools

import jax
import jax.numpy as jnp
from jax import lax
from jax.experimental import pallas as pl
from jax.experimental.pallas import tpu as pltpu

LANES = 128
SUBLANES = 8
MAX_TILE_ROWS = 2048  # 2048 x 128 f32 = 1 MiB per input per pipeline buffer


def _round_up(x, m):
    return ((x + m - 1) // m) * m


def _focal_loss_kernel(x_ref, t_ref, o_ref, acc_ref, *,
                       alpha, gamma, smooth, total_n, tile_rows, apply_mask):
    o = pl.program_id(0)   # parallel chunk axis
    i = pl.program_id(1)   # reduction axis within the chunk

    @pl.when(i == 0)
    def _():
        acc_ref[...] = jnp.zeros_like(acc_ref)

    x = x_ref[...].astype(jnp.float32) + smooth          # input = input + smooth
    t = t_ref[...].astype(jnp.float32)

    one_m_t = 1.0 - t                                    # == (target - 1) * -1
    p_t = x * t + (1.0 - x) * one_m_t                    # p_1 + p_0
    p_t = jnp.clip(p_t, smooth, 1.0 - smooth)            # clamp(p_t, smooth, 1-smooth)
    a_t = alpha * t + (1.0 - alpha) * one_m_t            # a_1 + a_0

    one_m_pt = 1.0 - p_t
    if float(gamma).is_integer():
        pow_term = lax.integer_pow(one_m_pt, int(gamma))     # VPU, no exp/log
    else:
        pow_term = jnp.power(one_m_pt, jnp.float32(gamma))   # general fallback
    focal = -a_t * pow_term * jnp.log(p_t)

    if apply_mask:
        # Zero out padded elements (flat index >= total_n).
        tile_idx = o * pl.num_programs(1) + i
        base = tile_idx * (tile_rows * LANES)
        flat = (base
                + lax.broadcasted_iota(jnp.int32, (tile_rows, LANES), 0) * LANES
                + lax.broadcasted_iota(jnp.int32, (tile_rows, LANES), 1))
        focal = jnp.where(flat < total_n, focal, 0.0)

    # Vector accumulate: fold (tile_rows, 128) -> (8, 128) with plain VPU adds;
    # no per-step cross-lane reduce, no scalar serialization.
    partial = focal.reshape(tile_rows // SUBLANES, SUBLANES, LANES).sum(axis=0)
    acc_ref[...] += partial

    @pl.when(i == pl.num_programs(1) - 1)
    def _():
        o_ref[0] = acc_ref[...]


def focal_loss(x, target, *, alpha=0.1, gamma=2, smooth=1e-06,
               max_tile_rows=MAX_TILE_ROWS, num_parallel_chunks=2):
    """Pallas TPU implementation of FocalLoss.forward(input, target) -> mean."""
    assert x.shape == target.shape
    total_n = x.size

    rows = pl.cdiv(total_n, LANES)
    tm = min(int(max_tile_rows), _round_up(rows, SUBLANES))
    tm = _round_up(tm, SUBLANES)

    n_tiles = pl.cdiv(rows, tm)
    n_outer = min(int(num_parallel_chunks), n_tiles)   # parallel chunks (TC split on v7x)
    n_inner = pl.cdiv(n_tiles, n_outer)
    n_tiles = n_outer * n_inner
    rows_padded = n_tiles * tm
    padded_n = rows_padded * LANES

    xf = x.reshape(-1).astype(jnp.float32)
    tf = target.reshape(-1).astype(jnp.float32)
    if padded_n != total_n:
        pad = padded_n - total_n
        xf = jnp.pad(xf, (0, pad))
        tf = jnp.pad(tf, (0, pad))
    x2 = xf.reshape(rows_padded, LANES)
    t2 = tf.reshape(rows_padded, LANES)

    kernel = functools.partial(
        _focal_loss_kernel,
        alpha=float(alpha),
        gamma=gamma,
        smooth=float(smooth),
        total_n=total_n,
        tile_rows=tm,
        apply_mask=(padded_n != total_n),
    )

    partial_sums = pl.pallas_call(
        kernel,
        out_shape=jax.ShapeDtypeStruct((n_outer, SUBLANES, LANES), jnp.float32),
        grid_spec=pltpu.PrefetchScalarGridSpec(
            num_scalar_prefetch=0,
            grid=(n_outer, n_inner),
            in_specs=[
                pl.BlockSpec((tm, LANES), lambda o, i: (o * n_inner + i, 0)),
                pl.BlockSpec((tm, LANES), lambda o, i: (o * n_inner + i, 0)),
            ],
            out_specs=pl.BlockSpec((1, SUBLANES, LANES), lambda o, i: (o, 0, 0)),
            scratch_shapes=[pltpu.VMEM((SUBLANES, LANES), jnp.float32)],
        ),
        compiler_params=pltpu.CompilerParams(
            dimension_semantics=("parallel", "arbitrary"),
        ),
    )(x2, t2)

    # One tiny cross-lane reduce outside the kernel finishes the mean.
    return jnp.sum(partial_sums) / jnp.float32(total_n)


def focal_loss_ref(x, target, *, alpha=0.1, gamma=2, smooth=1e-06):
    """Pure-JAX reference mirroring the PyTorch module exactly."""
    x = x + smooth
    p_1 = x * target
    p_0 = (1.0 - x) * ((target - 1.0) * -1.0)
    p_t = jnp.clip(p_1 + p_0, smooth, 1.0 - smooth)
    a_1 = alpha * target
    a_0 = (1.0 - alpha) * ((target - 1.0) * -1.0)
    a_t = a_1 + a_0
    fl = -1.0 * a_t * jnp.power(1.0 - p_t, gamma) * jnp.log(p_t)
    return jnp.mean(fl)


if __name__ == "__main__":
    key = jax.random.PRNGKey(0)
    k1, k2 = jax.random.split(key)

    # NCHW-shaped predictions in [0, 1] (e.g. sigmoid outputs) and binary targets.
    shape = (2, 4, 16, 16)
    x = jax.random.uniform(k1, shape, dtype=jnp.float32)
    target = (jax.random.uniform(k2, shape, dtype=jnp.float32) > 0.5).astype(jnp.float32)

    out = focal_loss(x, target)
    out = jax.block_until_ready(out)

    ref = focal_loss_ref(x, target)
    assert jnp.allclose(out, ref, rtol=1e-5, atol=1e-6), (out, ref)

    print("KERNEL_OK")
</pallas_src>

<mosaic_0001>
module attributes {stable_mosaic.version = 11 : i64} {
  func.func @_focal_loss_kernel(%arg0: i32, %arg1: i32, %arg2: memref<16x128xf32, #tpu.memory_space<vmem>>, %arg3: memref<16x128xf32, #tpu.memory_space<vmem>>, %arg4: memref<1x8x128xf32, #tpu.memory_space<vmem>>, %arg5: memref<8x128xf32, #tpu.memory_space<vmem>>) attributes {dimension_semantics = [#tpu.dimension_semantics<parallel>, #tpu.dimension_semantics<arbitrary>], iteration_bounds = array<i64: 1, 1>, scalar_prefetch = 0 : i64, scratch_operands = 1 : i64, tpu.core_type = #tpu.core_type<tc>, window_params = [{transform_indices = @transform_0, window_bounds = array<i64: 16, 128>}, {transform_indices = @transform_1, window_bounds = array<i64: 16, 128>}, {transform_indices = @transform_2, window_bounds = array<i64: 1, 8, 128>}]} {
    %c0_i32 = arith.constant 0 : i32
    %0 = arith.cmpi eq, %arg1, %c0_i32 : i32
    %1 = arith.extui %0 : i1 to i32
    %c0_i32_0 = arith.constant 0 : i32
    %2 = arith.cmpi ne, %1, %c0_i32_0 : i32
    scf.if %2 {
      %cst_19 = arith.constant 0.000000e+00 : f32
      %39 = vector.broadcast %cst_19 : f32 to vector<8x128xf32>
      %c0_20 = arith.constant 0 : index
      %c0_21 = arith.constant 0 : index
      %40 = vector.load %arg5[%c0_20, %c0_21] : memref<8x128xf32, #tpu.memory_space<vmem>>, vector<8x128xf32>
      tpu.vector_store %arg5[%c0_20, %c0_21], %39 {strides = array<i32>} : memref<8x128xf32, #tpu.memory_space<vmem>>, vector<8x128xf32>,
    } else {
    }
    %c0 = arith.constant 0 : index
    %c0_1 = arith.constant 0 : index
    %3 = vector.load %arg2[%c0, %c0_1] : memref<16x128xf32, #tpu.memory_space<vmem>>, vector<16x128xf32>
    %cst = arith.constant 9.99999997E-7 : f32
    %4 = vector.broadcast %cst : f32 to vector<16x128xf32>
    %5 = arith.addf %3, %4 : vector<16x128xf32>
    %c0_2 = arith.constant 0 : index
    %c0_3 = arith.constant 0 : index
    %6 = vector.load %arg3[%c0_2, %c0_3] : memref<16x128xf32, #tpu.memory_space<vmem>>, vector<16x128xf32>
    %cst_4 = arith.constant 1.000000e+00 : f32
    %7 = vector.broadcast %cst_4 : f32 to vector<16x128xf32>
    %8 = arith.subf %7, %6 : vector<16x128xf32>
    %9 = arith.mulf %5, %6 : vector<16x128xf32>
    %cst_5 = arith.constant 1.000000e+00 : f32
    %10 = vector.broadcast %cst_5 : f32 to vector<16x128xf32>
    %11 = arith.subf %10, %5 : vector<16x128xf32>
    %12 = arith.mulf %11, %8 : vector<16x128xf32>
    %13 = arith.addf %9, %12 : vector<16x128xf32>
    %cst_6 = arith.constant 9.99999997E-7 : f32
    %cst_7 = arith.constant 0.999998986 : f32
    %14 = vector.broadcast %cst_6 : f32 to vector<16x128xf32>
    %15 = arith.maximumf %14, %13 : vector<16x128xf32>
    %16 = vector.broadcast %cst_7 : f32 to vector<16x128xf32>
    %17 = arith.minimumf %16, %15 : vector<16x128xf32>
    %cst_8 = arith.constant 1.000000e-01 : f32
    %18 = vector.broadcast %cst_8 : f32 to vector<16x128xf32>
    %19 = arith.mulf %18, %6 : vector<16x128xf32>
    %cst_9 = arith.constant 0.899999976 : f32
    %20 = vector.broadcast %cst_9 : f32 to vector<16x128xf32>
    %21 = arith.mulf %20, %8 : vector<16x128xf32>
    %22 = arith.addf %19, %21 : vector<16x128xf32>
    %cst_10 = arith.constant 1.000000e+00 : f32
    %23 = vector.broadcast %cst_10 : f32 to vector<16x128xf32>
    %24 = arith.subf %23, %17 : vector<16x128xf32>
    %25 = arith.mulf %24, %24 : vector<16x128xf32>
    %cst_11 = arith.constant 0.000000e+00 : f32
    %26 = vector.broadcast %cst_11 : f32 to vector<16x128xf32>
    %27 = arith.subf %26, %22 : vector<16x128xf32>
    %28 = arith.mulf %27, %25 : vector<16x128xf32>
    %29 = math.log %17 : vector<16x128xf32>
    %30 = arith.mulf %28, %29 : vector<16x128xf32>
    %31 = vector.shape_cast %30 : vector<16x128xf32> to vector<2x8x128xf32>
    %cst_12 = arith.constant dense<0.000000e+00> : vector<8x128xf32>
    %32 = vector.multi_reduction <add>, %31, %cst_12 [0] : vector<2x8x128xf32> to vector<8x128xf32>
    %c0_13 = arith.constant 0 : index
    %c0_14 = arith.constant 0 : index
    %33 = vector.load %arg5[%c0_13, %c0_14] : memref<8x128xf32, #tpu.memory_space<vmem>>, vector<8x128xf32>
    %34 = arith.addf %33, %32 : vector<8x128xf32>
    %c0_15 = arith.constant 0 : index
    %c0_16 = arith.constant 0 : index
    %35 = vector.load %arg5[%c0_15, %c0_16] : memref<8x128xf32, #tpu.memory_space<vmem>>, vector<8x128xf32>
    tpu.vector_store %arg5[%c0_15, %c0_16], %34 {strides = array<i32>} : memref<8x128xf32, #tpu.memory_space<vmem>>, vector<8x128xf32>,
    %c0_i32_17 = arith.constant 0 : i32
    %36 = arith.cmpi eq, %arg1, %c0_i32_17 : i32
    %37 = arith.extui %36 : i1 to i32
    %c0_i32_18 = arith.constant 0 : i32
    %38 = arith.cmpi ne, %37, %c0_i32_18 : i32
    scf.if %38 {
      %c0_19 = arith.constant 0 : index
      %c0_20 = arith.constant 0 : index
      %39 = vector.load %arg5[%c0_19, %c0_20] : memref<8x128xf32, #tpu.memory_space<vmem>>, vector<8x128xf32>
      %c0_21 = arith.constant 0 : index
      %c0_22 = arith.constant 0 : index
      %c0_23 = arith.constant 0 : index
      %40 = vector.load %arg4[%c0_21, %c0_22, %c0_23] : memref<1x8x128xf32, #tpu.memory_space<vmem>>, vector<1x8x128xf32>
      %41 = vector.shape_cast %40 : vector<1x8x128xf32> to vector<8x128xf32>
      %42 = vector.shape_cast %39 : vector<8x128xf32> to vector<1x8x128xf32>
      tpu.vector_store %arg4[%c0_21, %c0_22, %c0_23], %42 {strides = array<i32>} : memref<1x8x128xf32, #tpu.memory_space<vmem>>, vector<1x8x128xf32>,
    } else {
    }
    return
  }
  func.func @transform_0(%arg0: i32, %arg1: i32) -> (i32, i32) {
    %c1_i32 = arith.constant 1 : i32
    %0 = arith.muli %arg0, %c1_i32 : i32
    %1 = arith.addi %0, %arg1 : i32
    %c0_i32 = arith.constant 0 : i32
    %c0_i32_0 = arith.constant 0 : i32
    return %1, %c0_i32 : i32, i32
  }
  func.func @transform_1(%arg0: i32, %arg1: i32) -> (i32, i32) {
    %c1_i32 = arith.constant 1 : i32
    %0 = arith.muli %arg0, %c1_i32 : i32
    %1 = arith.addi %0, %arg1 : i32
    %c0_i32 = arith.constant 0 : i32
    %c0_i32_0 = arith.constant 0 : i32
    return %1, %c0_i32 : i32, i32
  }
  func.func @transform_2(%arg0: i32, %arg1: i32) -> (i32, i32, i32) {
    %c0_i32 = arith.constant 0 : i32
    %c0_i32_0 = arith.constant 0 : i32
    %c0_i32_1 = arith.constant 0 : i32
    return %arg0, %c0_i32, %c0_i32_0 : i32, i32, i32
  }
}

</mosaic_0001>

<llo_original>
// kernel: tpu_custom_call.1
$region0: #{tpu_custom_call.1}
  #allocation0 [shape = 'u32[]', space=smem, size = 0x4, offset = 0x4, fixed_abs, tag = 'smem constant byte address 0x4 - core index']
  #allocation1 [shape = 'u32[144,128]{1,0:T(1,128)}', space=vmem, size = 0x12000, scoped, tag = 'internal scratch']
  #allocation2 [shape = 'f32[8,128]{1,0:T(8,128)}', space=vmem, size = 0x1000, scoped, tag = 'scratch operand']
  %s0 = inlined_call_operand.hbm [shape: f32[16,128], index: 0, kind: input, shape index: {}]
  %s1 = inlined_call_operand.hbm [shape: f32[16,128], index: 1, kind: input, shape index: {}]
  %s2 = inlined_call_operand.hbm [shape: f32[1,8,128], index: 2, kind: output, shape index: {}]
  %s3 = sld [smem:[#allocation0]]
  $region34: #{tpu_custom_call.1} parent=0
    _
  %s5 = ssub.s32 1, %s3
  %s6 = scalar_select 0, %s5, %s3
  $region1: #{tpu_custom_call.1} parent=0
    #allocation3 [shape = 'u8[8192]{0}', space=vmem, size = 0x2000, scoped, tag = 'input window, operand 0, single buffered']
    #allocation4 [shape = 's32[1]{0}', space=sflag, size = 0x4, scoped, tag = 'scoped memory for tpu_custom_call.1']
    #allocation5 [shape = 's32[1]{0}', space=sflag, size = 0x4, scoped, tag = 'scoped memory for tpu_custom_call.1']
    #allocation6 [shape = 'u8[8192]{0}', space=vmem, size = 0x2000, scoped, tag = 'input window, operand 1, single buffered']
    #allocation7 [shape = 's32[1]{0}', space=sflag, size = 0x4, scoped, tag = 'scoped memory for tpu_custom_call.1']
    #allocation8 [shape = 'u8[4096]{0}', space=vmem, size = 0x1000, scoped, tag = 'output window, operand 0, single buffered']
    %7 = vsyncpa [#allocation4], 0
    %8 = vsyncpa [#allocation7], 0
    %9 = vsyncpa [#allocation5], 0
    // Predicated region
    $region2: #{tpu_custom_call.1} parent=1 // pred_check
      _
    $region3: #{tpu_custom_call.1} parent=1 // pred_check_branch
      %11 = sbr.rel (0) target = $region5
    $region4: #{tpu_custom_call.1} parent=1 // pred_region
      %s12 = sadd.s32 0, 0
      %s13 = smul.u32 2, %s12
      %s15 = ssub.s32 256, 256
      %16 = vsyncadd [#allocation4], %s15
      %s17 = smul.addr %s13, 128
      %s18 = scalar_lea.hbm %s0, %s17
      %s19 = sshll.u32 [#allocation3], 4
      %s20 = int_to_ptr.vmem [resolvable:$true] %s19
      %25 = dma.hbm_to_vmem [thread:$0]  %s18, 256, %s20, [#allocation4], 128, 128, 8
    $region5: #{tpu_custom_call.1} parent=1 // pred_fallthru
      _
    // Predicated region
    $region6: #{tpu_custom_call.1} parent=1 // pred_check
      _
    $region7: #{tpu_custom_call.1} parent=1 // pred_check_branch
      %27 = sbr.rel (0) target = $region9
    $region8: #{tpu_custom_call.1} parent=1 // pred_region
      %s28 = sadd.s32 0, 0
      %s29 = smul.u32 2, %s28
      %s31 = ssub.s32 256, 256
      %32 = vsyncadd [#allocation7], %s31
      %s33 = smul.addr %s29, 128
      %s34 = scalar_lea.hbm %s1, %s33
      %s35 = sshll.u32 [#allocation6], 4
      %s36 = int_to_ptr.vmem [resolvable:$true] %s35
      %41 = dma.hbm_to_vmem [thread:$0]  %s34, 256, %s36, [#allocation7], 128, 128, 8
    $region9: #{tpu_custom_call.1} parent=1 // pred_fallthru
      _
    // Predicated region
    $region10: #{tpu_custom_call.1} parent=1 // pred_check
      _
    $region11: #{tpu_custom_call.1} parent=1 // pred_check_branch
      %43 = sbr.rel (0) target = $region13
    $region12: #{tpu_custom_call.1} parent=1 // pred_region
      %44 = dma.done [#allocation4], 256
    $region13: #{tpu_custom_call.1} parent=1 // pred_fallthru
      _
    // Predicated region
    $region14: #{tpu_custom_call.1} parent=1 // pred_check
      _
    $region15: #{tpu_custom_call.1} parent=1 // pred_check_branch
      %46 = sbr.rel (0) target = $region17
    $region16: #{tpu_custom_call.1} parent=1 // pred_region
      %47 = dma.done [#allocation7], 256
    $region17: #{tpu_custom_call.1} parent=1 // pred_fallthru
      _
    %s48 = sadd.s32 0, 0
    %s49 = smul.u32 2, %s48
    %s50 = sadd.s32 0, 0
    %s51 = smul.u32 2, %s50
    %p52 = scmp.eq.s32.totalorder 0, 0
    // Predicated region
    $region18: #{tpu_custom_call.1} parent=1 // pred_check
      %p53 = pneg %p52
    $region19: #{tpu_custom_call.1} parent=1 // pred_check_branch
      %55 = sbr.rel (%p53) target = $region21
    $region20: #{tpu_custom_call.1} parent=1 // pred_region
      %56 = vst [vmem:[#allocation2] sm:$0xff] 0.0
    $region21: #{tpu_custom_call.1} parent=1 // pred_fallthru
      _
    %v57 = vld [vmem:[#allocation3] sm:$0xff]
    %v58 = vld [vmem:[#allocation3 + $0x8] sm:$0xff]
    %v59 = vadd.f32 %v57, 1e-06
    %v60 = vadd.f32 %v58, 1e-06
    %v61 = vld [vmem:[#allocation6] sm:$0xff]
    %v62 = vld [vmem:[#allocation6 + $0x8] sm:$0xff]
    %v63 = vsub.f32 1.0, %v61
    %v64 = vsub.f32 1.0, %v62
    %v65 = vmul.f32 %v59, %v61
    %v66 = vmul.f32 %v60, %v62
    %v67 = vsub.f32 1.0, %v59
    %v68 = vsub.f32 1.0, %v60
    %v69 = vmul.f32 %v67, %v63
    %v70 = vmul.f32 %v68, %v64
    %v71 = vadd.f32 %v65, %v69
    %v72 = vadd.f32 %v66, %v70
    %v73 = vmax.f32 %v71, 1e-06
    %v74 = vmax.f32 %v72, 1e-06
    %v75 = vmin.f32 %v73, 0.999999
    %v76 = vmin.f32 %v74, 0.999999
    %v77 = vmul.f32 %v61, 0.1
    %v78 = vmul.f32 %v62, 0.1
    %v79 = vmul.f32 %v63, 0.9
    %v80 = vmul.f32 %v64, 0.9
    %v81 = vadd.f32 %v77, %v79
    %v82 = vadd.f32 %v78, %v80
    %v83 = vsub.f32 1.0, %v75
    %v84 = vsub.f32 1.0, %v76
    %v85 = vmul.f32 %v83, %v83
    %v86 = vmul.f32 %v84, %v84
    %v87 = vsub.f32 0.0, %v81
    %v88 = vsub.f32 0.0, %v82
    %v89 = vmul.f32 %v87, %v85
    %v90 = vmul.f32 %v88, %v86
    %v91 = vlog2.pop %v75
    %v92 = vmul.f32 %v91, 0.6931472
    %v93 = vlog2.pop %v76
    %v94 = vmul.f32 %v93, 0.6931472
    %v95 = vmul.f32 %v89, %v92
    %v96 = vmul.f32 %v90, %v94
    %v97 = vadd.f32 %v95, %v96
    %v98 = vld [vmem:[#allocation2] sm:$0xff]
    %v99 = vadd.f32 %v98, %v97
    %100 = vst [vmem:[#allocation2] sm:$0xff] %v99
    // Predicated region
    $region22: #{tpu_custom_call.1} parent=1 // pred_check
      %p101 = pneg %p52
    $region23: #{tpu_custom_call.1} parent=1 // pred_check_branch
      %103 = sbr.rel (%p101) target = $region25
    $region24: #{tpu_custom_call.1} parent=1 // pred_region
      %v104 = vld [vmem:[#allocation2] sm:$0xff]
      %105 = vst [vmem:[#allocation8] sm:$0xff] %v104
    $region25: #{tpu_custom_call.1} parent=1 // pred_fallthru
      _
    // Predicated region
    $region26: #{tpu_custom_call.1} parent=1 // pred_check
      _
    $region27: #{tpu_custom_call.1} parent=1 // pred_check_branch
      %107 = sbr.rel (0) target = $region29
    $region28: #{tpu_custom_call.1} parent=1 // pred_region
      %s109 = ssub.s32 128, 128
      %110 = vsyncadd [#allocation5], %s109
      %s112 = sshll.u32 [#allocation8], 4
      %s113 = int_to_ptr.vmem [resolvable:$true] %s112
      %115 = dma.vmem_to_hbm [thread:$0]  %s113, 128, %s2, [#allocation5]
    $region29: #{tpu_custom_call.1} parent=1 // pred_fallthru
      _
    // Predicated region
    $region30: #{tpu_custom_call.1} parent=1 // pred_check
      _
    $region31: #{tpu_custom_call.1} parent=1 // pred_check_branch
      %117 = sbr.rel (0) target = $region33
    $region32: #{tpu_custom_call.1} parent=1 // pred_region
      %118 = dma.done [#allocation5], 128
    $region33: #{tpu_custom_call.1} parent=1 // pred_fallthru
      _
    %119 = vsyncpa [#allocation4], 1
    %120 = vsyncpa [#allocation7], 1
    %121 = vsyncpa [#allocation5], 1

</llo_original>
